<compile_context>
chip_gen: v7x
topology: tpu7x:2x2x1
jax: 0.10.0
libtpu: 0.0.40
codegen_flags: <defaults>
</compile_context>

<pallas_src>
import jax
import jax.numpy as jnp
from jax import lax
from jax.experimental import pallas as pl
from jax.experimental.pallas import tpu as pltpu

SMOOTH_K = 100.0  # self.smooth_factor


def sdf_fun(a, x, *, tn=4096, chunk_n=512, chunk_p=32):
    """Pallas implementation of SDFFun.forward.

    a: (B, P*4) or (B, P, 4) float32 primitive parameters
    x: (B, N, 3) float32 query points
    returns: (B, N, 1) float32
    """
    B = a.shape[0]
    a = a.reshape(B, -1, 4).astype(jnp.float32)        # (B, P, 4)
    P = a.shape[1]
    N = x.shape[1]
    K = SMOOTH_K
    inv_k = 1.0 / K

    # ---------------- N tiling ----------------
    n_pad128 = ((N + 127) // 128) * 128
    tn = max(128, (int(tn) // 128) * 128)
    tn = min(tn, n_pad128)                              # don't exceed problem size
    ch_n = max(128, (min(int(chunk_n), tn) // 128) * 128)
    tn = max(ch_n, (tn // ch_n) * ch_n)                 # tn multiple of ch_n
    if B == 1 and n_pad128 >= 2 * ch_n:
        # Keep >= 2 parallel grid steps so v7x's 2 TensorCores both get work.
        half = ((n_pad128 // 2 + ch_n - 1) // ch_n) * ch_n
        tn = max(ch_n, min(tn, half))
    n_pad = ((N + tn - 1) // tn) * tn
    n_chunks = tn // ch_n

    # ---------------- P tiling ----------------
    p_pad8 = max(8, ((P + 7) // 8) * 8)
    ch_p = max(8, (int(chunk_p) // 8) * 8)
    ch_p = min(ch_p, p_pad8)
    p_pad = ((P + ch_p - 1) // ch_p) * ch_p
    p_chunks = p_pad // ch_p

    # -------- K-prescaled parameters (tiny XLA ops) --------
    # neg_kd = K*exp(logr) - ||K*x - K*c||  ==  -K * d
    kr = K * jnp.exp(a[:, :, 0])                        # (B, P)
    pk = jnp.concatenate([kr[..., None], K * a[:, :, 1:4]], axis=-1)  # (B, P, 4)
    if p_pad != P:
        pk = jnp.pad(pk, ((0, 0), (0, p_pad - P), (0, 0)))
        # Padded primitives get a hugely negative "kr" so exp(...) underflows to 0.
        pk = pk.at[:, P:, 0].set(-1e30)

    # Lane-dense point layout (points on lanes); K-scale folded into the transpose pass.
    xt = jnp.transpose(x.astype(jnp.float32), (0, 2, 1)) * K   # (B, 3, N)
    if n_pad != N:
        xt = jnp.pad(xt, ((0, 0), (0, 0), (0, n_pad - N)))     # harmless pad points

    # ---------------- kernel ----------------
    def kernel(p_ref, x_ref, o_ref):
        # p_ref: (1, p_pad, 4)  [K*exp(logr), K*cx, K*cy, K*cz]
        # x_ref: (1, 3, tn)     K-scaled points
        # o_ref: (1, 1, tn)
        if p_chunks == 1:
            pfull = p_ref[0]                            # (p_pad, 4); hoisted (loop-invariant)
            krc = pfull[:, 0:1]
            c0 = pfull[:, 1:2]
            c1 = pfull[:, 2:3]
            c2 = pfull[:, 3:4]

        def n_body(cn, carry):
            ns = cn * ch_n
            if not isinstance(ns, int):
                ns = pl.multiple_of(ns, ch_n)
            xs = x_ref[:, :, pl.ds(ns, ch_n)][0]        # (3, ch_n)
            x0 = xs[0:1, :]
            x1 = xs[1:2, :]
            x2 = xs[2:3, :]

            def neg_kd_from(kr_col, a0, a1, a2):
                d0 = a0 - x0
                sq = d0 * d0
                d1 = a1 - x1
                sq = sq + d1 * d1
                d2 = a2 - x2
                sq = sq + d2 * d2
                return kr_col - jnp.sqrt(sq)            # (ch_p, ch_n) = -K*d

            if p_chunks == 1:
                nkd = neg_kd_from(krc, c0, c1, c2)
                m = jnp.max(nkd, axis=0, keepdims=True)             # (1, ch_n)
                l = jnp.sum(jnp.exp(nkd - m), axis=0, keepdims=True)
            else:
                def p_body(cp, mc):
                    m, l = mc
                    ps = pl.multiple_of(cp * ch_p, ch_p)
                    pp = p_ref[:, pl.ds(ps, ch_p), :][0]            # (ch_p, 4)
                    nkd = neg_kd_from(pp[:, 0:1], pp[:, 1:2], pp[:, 2:3], pp[:, 3:4])
                    cm = jnp.max(nkd, axis=0, keepdims=True)
                    m_new = jnp.maximum(m, cm)
                    l = l * jnp.exp(m - m_new) + jnp.sum(
                        jnp.exp(nkd - m_new), axis=0, keepdims=True)
                    return m_new, l

                m0 = jnp.full((1, ch_n), -jnp.inf, jnp.float32)
                l0 = jnp.zeros((1, ch_n), jnp.float32)
                m, l = lax.fori_loop(0, p_chunks, p_body, (m0, l0),
                                     unroll=(p_chunks <= 4))

            res = (-(m + jnp.log(l)) * inv_k).reshape(1, 1, ch_n)   # soft-min, /K
            o_ref[:, :, pl.ds(ns, ch_n)] = res
            return carry

        if n_chunks == 1:
            n_body(0, 0)
        else:
            lax.fori_loop(0, n_chunks, n_body, 0,
                          unroll=(n_chunks <= 8 and p_chunks == 1))

    # Explicit scoped-VMEM limit: params block lane-pads 4->128 (512 B/prim, x2
    # buffers); x/out blocks are tiny.  Floor 32 MiB, cap 48 MiB (safe on v7x's 64 MiB).
    vmem_limit = 2 * (512 * p_pad + 64 * tn) + (16 << 20)
    vmem_limit = int(min(max(vmem_limit, 32 << 20), 48 << 20))

    out = pl.pallas_call(
        kernel,
        out_shape=jax.ShapeDtypeStruct((B, 1, n_pad), jnp.float32),
        grid_spec=pltpu.PrefetchScalarGridSpec(
            num_scalar_prefetch=0,
            grid=(B, n_pad // tn),                      # N-tile axis innermost
            in_specs=[
                # Per-batch params: constant block index over inner axis -> stays resident.
                pl.BlockSpec((1, p_pad, 4), lambda b, n: (b, 0, 0)),
                pl.BlockSpec((1, 3, tn), lambda b, n: (b, 0, n)),
            ],
            out_specs=pl.BlockSpec((1, 1, tn), lambda b, n: (b, 0, n)),
        ),
        compiler_params=pltpu.CompilerParams(
            dimension_semantics=("parallel", "parallel"),
            vmem_limit_bytes=vmem_limit,
        ),
    )(pk, xt)

    return out[:, 0, :N][..., None]                     # (B, N, 1)


def sdf_fun_ref(a, x):
    """Pure-JAX reference mirroring the PyTorch code path."""
    B = a.shape[0]
    p = a.reshape(B, -1, 4)
    xx = x[:, :, None, :]                 # (B, N, 1, 3)
    pp = p[:, None, :, :]                 # (B, 1, P, 4)
    logr = pp[:, :, :, 0]                 # (B, 1, P)
    d = jnp.sqrt(jnp.sum((xx - pp[:, :, :, 1:4]) ** 2, axis=-1)) - jnp.exp(logr)
    return -jax.scipy.special.logsumexp(-SMOOTH_K * d, axis=-1, keepdims=True) / SMOOTH_K


def _run_case(key, B, P, N):
    k_a, k_x = jax.random.split(key)
    logr = jnp.log(0.2) + 0.1 * jax.random.normal(k_a, (B, P, 1), dtype=jnp.float32)
    centers = jax.random.uniform(k_a, (B, P, 3), minval=-1.0, maxval=1.0,
                                 dtype=jnp.float32)
    a = jnp.concatenate([logr, centers], axis=-1).reshape(B, P * 4)
    x = jax.random.uniform(k_x, (B, N, 3), minval=-1.0, maxval=1.0,
                           dtype=jnp.float32)

    out = jax.block_until_ready(sdf_fun(a, x))
    ref = jax.block_until_ready(sdf_fun_ref(a, x))
    assert out.shape == (B, N, 1), out.shape
    err = float(jnp.max(jnp.abs(out - ref)))
    assert err < 1e-5, err


if __name__ == "__main__":
    key = jax.random.PRNGKey(0)
    k1, k2 = jax.random.split(key)

    # Small case: single N chunk, single P chunk (hoisted fast path).
    _run_case(k1, B=2, P=16, N=64)
    # Exercises: B==1 (>=2 N tiles for v7x), online soft-min over P chunks with
    # padded primitives, in-kernel N sub-chunk loop, padded points.
    _run_case(k2, B=1, P=80, N=1200)

    print("KERNEL_OK")
</pallas_src>

<mosaic_0001>
module attributes {stable_mosaic.version = 11 : i64} {
  func.func @kernel(%arg0: i32, %arg1: i32, %arg2: memref<1x16x4xf32, #tpu.memory_space<vmem>>, %arg3: memref<1x3x128xf32, #tpu.memory_space<vmem>>, %arg4: memref<1x1x128xf32, #tpu.memory_space<vmem>>) attributes {dimension_semantics = [#tpu.dimension_semantics<parallel>, #tpu.dimension_semantics<parallel>], iteration_bounds = array<i64: 2, 1>, scalar_prefetch = 0 : i64, scratch_operands = 0 : i64, tpu.core_type = #tpu.core_type<tc>, window_params = [{transform_indices = @transform_0, window_bounds = array<i64: 1, 16, 4>}, {transform_indices = @transform_1, window_bounds = array<i64: 1, 3, 128>}, {transform_indices = @transform_2, window_bounds = array<i64: 1, 1, 128>}]} {
    %c0 = arith.constant 0 : index
    %c0_0 = arith.constant 0 : index
    %c0_1 = arith.constant 0 : index
    %0 = vector.load %arg2[%c0, %c0_0, %c0_1] : memref<1x16x4xf32, #tpu.memory_space<vmem>>, vector<1x16x4xf32>
    %1 = vector.shape_cast %0 : vector<1x16x4xf32> to vector<16x4xf32>
    %2 = vector.extract_strided_slice %1 {offsets = [0, 0], sizes = [16, 1], strides = [1, 1]} : vector<16x4xf32> to vector<16x1xf32>
    %3 = vector.extract_strided_slice %1 {offsets = [0, 1], sizes = [16, 1], strides = [1, 1]} : vector<16x4xf32> to vector<16x1xf32>
    %4 = vector.extract_strided_slice %1 {offsets = [0, 2], sizes = [16, 1], strides = [1, 1]} : vector<16x4xf32> to vector<16x1xf32>
    %5 = vector.extract_strided_slice %1 {offsets = [0, 3], sizes = [16, 1], strides = [1, 1]} : vector<16x4xf32> to vector<16x1xf32>
    %c0_2 = arith.constant 0 : index
    %c0_3 = arith.constant 0 : index
    %c0_4 = arith.constant 0 : index
    %6 = vector.load %arg3[%c0_2, %c0_3, %c0_4] : memref<1x3x128xf32, #tpu.memory_space<vmem>>, vector<1x3x128xf32>
    %7 = vector.shape_cast %6 : vector<1x3x128xf32> to vector<3x128xf32>
    %8 = vector.extract_strided_slice %7 {offsets = [0, 0], sizes = [1, 128], strides = [1, 1]} : vector<3x128xf32> to vector<1x128xf32>
    %9 = vector.extract_strided_slice %7 {offsets = [1, 0], sizes = [1, 128], strides = [1, 1]} : vector<3x128xf32> to vector<1x128xf32>
    %10 = vector.extract_strided_slice %7 {offsets = [2, 0], sizes = [1, 128], strides = [1, 1]} : vector<3x128xf32> to vector<1x128xf32>
    %11 = vector.broadcast %3 : vector<16x1xf32> to vector<16x128xf32>
    %12 = vector.broadcast %8 : vector<1x128xf32> to vector<16x128xf32>
    %13 = arith.subf %11, %12 : vector<16x128xf32>
    %14 = arith.mulf %13, %13 : vector<16x128xf32>
    %15 = vector.broadcast %4 : vector<16x1xf32> to vector<16x128xf32>
    %16 = vector.broadcast %9 : vector<1x128xf32> to vector<16x128xf32>
    %17 = arith.subf %15, %16 : vector<16x128xf32>
    %18 = arith.mulf %17, %17 : vector<16x128xf32>
    %19 = arith.addf %14, %18 : vector<16x128xf32>
    %20 = vector.broadcast %5 : vector<16x1xf32> to vector<16x128xf32>
    %21 = vector.broadcast %10 : vector<1x128xf32> to vector<16x128xf32>
    %22 = arith.subf %20, %21 : vector<16x128xf32>
    %23 = arith.mulf %22, %22 : vector<16x128xf32>
    %24 = arith.addf %19, %23 : vector<16x128xf32>
    %25 = math.sqrt %24 : vector<16x128xf32>
    %26 = vector.broadcast %2 : vector<16x1xf32> to vector<16x128xf32>
    %27 = arith.subf %26, %25 : vector<16x128xf32>
    %cst = arith.constant dense<0xFF800000> : vector<128xf32>
    %28 = vector.multi_reduction <maximumf>, %27, %cst [0] : vector<16x128xf32> to vector<128xf32>
    %29 = vector.shape_cast %28 : vector<128xf32> to vector<1x128xf32>
    %30 = vector.broadcast %29 : vector<1x128xf32> to vector<16x128xf32>
    %31 = arith.subf %27, %30 : vector<16x128xf32>
    %32 = math.exp %31 : vector<16x128xf32>
    %cst_5 = arith.constant dense<0.000000e+00> : vector<128xf32>
    %33 = vector.multi_reduction <add>, %32, %cst_5 [0] : vector<16x128xf32> to vector<128xf32>
    %34 = vector.shape_cast %33 : vector<128xf32> to vector<1x128xf32>
    %35 = math.log %34 : vector<1x128xf32>
    %36 = arith.addf %29, %35 : vector<1x128xf32>
    %cst_6 = arith.constant 0.000000e+00 : f32
    %37 = vector.broadcast %cst_6 : f32 to vector<1x128xf32>
    %38 = arith.subf %37, %36 : vector<1x128xf32>
    %cst_7 = arith.constant 0.00999999977 : f32
    %39 = vector.broadcast %cst_7 : f32 to vector<1x128xf32>
    %40 = arith.mulf %38, %39 : vector<1x128xf32>
    %41 = vector.shape_cast %40 : vector<1x128xf32> to vector<1x1x128xf32>
    %c0_8 = arith.constant 0 : index
    %c0_9 = arith.constant 0 : index
    %c0_10 = arith.constant 0 : index
    %42 = vector.load %arg4[%c0_8, %c0_9, %c0_10] : memref<1x1x128xf32, #tpu.memory_space<vmem>>, vector<1x1x128xf32>
    tpu.vector_store %arg4[%c0_8, %c0_9, %c0_10], %41 {strides = array<i32>} : memref<1x1x128xf32, #tpu.memory_space<vmem>>, vector<1x1x128xf32>,
    return
  }
  func.func @transform_0(%arg0: i32, %arg1: i32) -> (i32, i32, i32) {
    %c0_i32 = arith.constant 0 : i32
    %c0_i32_0 = arith.constant 0 : i32
    %c0_i32_1 = arith.constant 0 : i32
    return %arg0, %c0_i32, %c0_i32_0 : i32, i32, i32
  }
  func.func @transform_1(%arg0: i32, %arg1: i32) -> (i32, i32, i32) {
    %c0_i32 = arith.constant 0 : i32
    %c0_i32_0 = arith.constant 0 : i32
    return %arg0, %c0_i32, %arg1 : i32, i32, i32
  }
  func.func @transform_2(%arg0: i32, %arg1: i32) -> (i32, i32, i32) {
    %c0_i32 = arith.constant 0 : i32
    %c0_i32_0 = arith.constant 0 : i32
    return %arg0, %c0_i32, %arg1 : i32, i32, i32
  }
}

</mosaic_0001>

<llo_original>
// kernel: tpu_custom_call.1
$region0: #{tpu_custom_call.1}
  #allocation0 [shape = 'u32[]', space=smem, size = 0x4, offset = 0x4, fixed_abs, tag = 'smem constant byte address 0x4 - core index']
  #allocation1 [shape = 'u32[144,128]{1,0:T(1,128)}', space=vmem, size = 0x12000, scoped, tag = 'internal scratch']
  %s0 = inlined_call_operand.vmem [shape: f32[2,16,4], index: 0, kind: input, shape index: {}]
  %s1 = inlined_call_operand.vmem [shape: f32[2,3,128], index: 1, kind: input, shape index: {}]
  %s2 = inlined_call_operand.hbm [shape: f32[2,1,128], index: 2, kind: output, shape index: {}]
  %s3 = sld [smem:[#allocation0]]
  $region41: #{tpu_custom_call.1} parent=0
    _
  %s5 = ssub.s32 1, %s3
  %s6 = scalar_select 0, %s5, %s3
  $region1: #{tpu_custom_call.1} parent=0
    #allocation2 [shape = 'u8[1024]{0}', space=vmem, size = 0x400, scoped, tag = 'output window, operand 0']
    #allocation3 [shape = 's32[2]{0}', space=sflag, size = 0x8, scoped, tag = 'scoped memory for tpu_custom_call.1']
    %7 = vsyncpa [#allocation3], 0
    %s8 = scalar_lea.sflag [#allocation3], 1
    %9 = vsyncpa %s8, 0
    loop: start=0, step=1, limit=4
    $region2: #{tpu_custom_call.1} parent=1 // loop_pre_header
      _
    $region3: #{tpu_custom_call.1} parent=1 // loop_header
      %s11 = sphi 0, %s15
      %p12 = scmp.ge.s32.totalorder %s11, 4
      %s18 = sphi 0, %s30
      %s19 = sphi 0, %s26
      %s20 = sphi 0, %s18
      %s21 = sphi 0, %s19
      %s22 = sphi 0, %s20
      %s23 = sphi 0, %s21
      %s33 = sphi 0, %s35
      %s36 = sphi 0, %s33
      %s37 = sphi 0, %s36
      %s53 = sphi 0, %s37
      %s61 = sphi 0, %s63
      %s64 = sphi 0, %s61
      %s65 = sphi 0, %s64
      %s81 = sphi 0, %s65
      %s89 = sphi 0, %s91
      %s92 = sphi 0, %s89
      %s93 = sphi 0, %s92
      %s109 = sphi 0, %s93
    $region4: #{tpu_custom_call.1} parent=1 // loop_header_branch
      %14 = sbr.rel (%p12) target = $region8
    $region5: #{tpu_custom_call.1} parent=1 // loop_body
      %s16 = ssub.s32 %s11, 1
      %s17 = ssub.s32 %s11, 2
      %s24 = sadd.s32 1, %s19
      %p25 = scmp.ge.s32.totalorder %s24, 1
      %s26 = scalar_select %p25, 0, %s24
      %s27 = sadd.s32 1, %s18
      %s28 = scalar_select %p25, %s27, %s18
      %p29 = scmp.ge.s32.totalorder %s28, 2
      %s30 = scalar_select %p29, 0, %s28
      %s31 = ssub.s32 %s18, %s30
      %p32 = scmp.eq.s32.totalorder %s31, 0
      %s34 = sadd.s32 %s33, 1
      %s35 = scalar_select %p32, %s33, %s34
      %p38 = pneg %p32
      %p39 = scmp.eq.s32.totalorder %s11, 1
      %p40 = por %p38, %p39
      %p41 = scmp.ne.s32.totalorder %s33, %s36
      %p42 = scmp.eq.s32.totalorder %s11, 0
      %p43 = por %p41, %p42
      %p44 = scmp.ne.s32.totalorder %s33, %s36
      %p45 = scmp.eq.s32.totalorder %s16, 1
      %p46 = por %p44, %p45
      %p47 = scmp.ne.s32.totalorder %s36, %s37
      %p48 = scmp.eq.s32.totalorder %s16, 0
      %p49 = por %p47, %p48
      %p50 = scmp.ne.s32.totalorder %s36, %s37
      %p51 = scmp.eq.s32.totalorder %s17, 1
      %p52 = por %p50, %p51
      %p54 = scmp.ne.s32.totalorder %s37, %s53
      %p55 = scmp.eq.s32.totalorder %s17, 0
      %p56 = por %p54, %p55
      %s57 = ssub.s32 %s18, %s30
      %s58 = ssub.s32 %s19, %s26
      %s59 = sor.u32 %s57, %s58
      %p60 = scmp.eq.s32.totalorder %s59, 0
      %s62 = sadd.s32 %s61, 1
      %s63 = scalar_select %p60, %s61, %s62
      %p66 = pneg %p60
      %p67 = scmp.eq.s32.totalorder %s11, 1
      %p68 = por %p66, %p67
      %p69 = scmp.ne.s32.totalorder %s61, %s64
      %p70 = scmp.eq.s32.totalorder %s11, 0
      %p71 = por %p69, %p70
      %p72 = scmp.ne.s32.totalorder %s61, %s64
      %p73 = scmp.eq.s32.totalorder %s16, 1
      %p74 = por %p72, %p73
      %p75 = scmp.ne.s32.totalorder %s64, %s65
      %p76 = scmp.eq.s32.totalorder %s16, 0
      %p77 = por %p75, %p76
      %p78 = scmp.ne.s32.totalorder %s64, %s65
      %p79 = scmp.eq.s32.totalorder %s17, 1
      %p80 = por %p78, %p79
      %p82 = scmp.ne.s32.totalorder %s65, %s81
      %p83 = scmp.eq.s32.totalorder %s17, 0
      %p84 = por %p82, %p83
      %s85 = ssub.s32 %s18, %s30
      %s86 = ssub.s32 %s19, %s26
      %s87 = sor.u32 %s85, %s86
      %p88 = scmp.eq.s32.totalorder %s87, 0
      %s90 = sadd.s32 %s89, 1
      %s91 = scalar_select %p88, %s89, %s90
      %p94 = pneg %p88
      %p95 = scmp.eq.s32.totalorder %s11, 1
      %p96 = por %p94, %p95
      %p97 = scmp.ne.s32.totalorder %s89, %s92
      %p98 = scmp.eq.s32.totalorder %s11, 0
      %p99 = por %p97, %p98
      %p100 = scmp.ne.s32.totalorder %s89, %s92
      %p101 = scmp.eq.s32.totalorder %s16, 1
      %p102 = por %p100, %p101
      %p103 = scmp.ne.s32.totalorder %s92, %s93
      %p104 = scmp.eq.s32.totalorder %s16, 0
      %p105 = por %p103, %p104
      %p106 = scmp.ne.s32.totalorder %s92, %s93
      %p107 = scmp.eq.s32.totalorder %s17, 1
      %p108 = por %p106, %p107
      %p110 = scmp.ne.s32.totalorder %s93, %s109
      %p111 = scmp.eq.s32.totalorder %s17, 0
      %p112 = por %p110, %p111
      %p113 = scmp.le.s32.totalorder 1, %s11
      %p114 = scmp.lt.s32.totalorder %s11, 3
      %p115 = pnand %p113, %p114
      %p116 = pneg %p115
      // Predicated region
      $region9: #{tpu_custom_call.1} parent=5 // pred_check
        _
      $region10: #{tpu_custom_call.1} parent=5 // pred_check_branch
        %118 = sbr.rel (%p115) target = $region12
      $region11: #{tpu_custom_call.1} parent=5 // pred_region
        %s119 = ssub.s32 %s11, 1
      $region12: #{tpu_custom_call.1} parent=5 // pred_fallthru
        _
      %p120 = scmp.lt.s32.totalorder %s11, 2
      // Predicated region
      $region13: #{tpu_custom_call.1} parent=5 // pred_check
        %p121 = pneg %p120
      $region14: #{tpu_custom_call.1} parent=5 // pred_check_branch
        %123 = sbr.rel (%p121) target = $region16
      $region15: #{tpu_custom_call.1} parent=5 // pred_region
        // Predicated region
        $region17: #{tpu_custom_call.1} parent=15 // pred_check
          %p124 = pneg %p43
        $region18: #{tpu_custom_call.1} parent=15 // pred_check_branch
          %126 = sbr.rel (%p124) target = $region20
        $region19: #{tpu_custom_call.1} parent=15 // pred_region
          %p127 = scmp.lt.s32.totalorder %s18, 1
          %s128 = scalar_select %p127, %s18, 1
          %s129 = smul.addr %s128, 2
          %s130 = smul.addr %s129, 8
          %s131 = scalar_lea.vmem %s0, %s130
        $region20: #{tpu_custom_call.1} parent=15 // pred_fallthru
          _
        // Predicated region
        $region21: #{tpu_custom_call.1} parent=15 // pred_check
          %p132 = pneg %p71
        $region22: #{tpu_custom_call.1} parent=15 // pred_check_branch
          %134 = sbr.rel (%p132) target = $region24
        $region23: #{tpu_custom_call.1} parent=15 // pred_region
          %p135 = scmp.lt.s32.totalorder %s18, 1
          %s136 = scalar_select %p135, %s18, 1
          %p137 = scmp.lt.s32.totalorder %s19, 0
          %s138 = scalar_select %p137, %s19, 0
          %s139 = sadd.s32 %s138, %s136
          %s140 = smul.addr %s139, 4
          %s141 = scalar_lea.vmem %s1, %s140
        $region24: #{tpu_custom_call.1} parent=15 // pred_fallthru
          _
      $region16: #{tpu_custom_call.1} parent=5 // pred_fallthru
        _
      %p142 = scmp.le.s32.totalorder 1, %s11
      %p143 = scmp.lt.s32.totalorder %s11, 3
      %p144 = pnand %p142, %p143
      %p145 = pneg %p144
      // Predicated region
      $region25: #{tpu_custom_call.1} parent=5 // pred_check
        _
      $region26: #{tpu_custom_call.1} parent=5 // pred_check_branch
        %147 = sbr.rel (%p144) target = $region28
      $region27: #{tpu_custom_call.1} parent=5 // pred_region
        %s148 = ssub.s32 %s11, 1
        %p149 = scmp.lt.s32.totalorder %s20, 1
        %s150 = scalar_select %p149, %s20, 1
        %s151 = smul.addr %s150, 2
        %s152 = smul.addr %s151, 8
        %s153 = scalar_lea.vmem %s0, %s152
        %p154 = pneg %p49
        %p155 = pneg %p46
        %p156 = scmp.lt.s32.totalorder %s20, 1
        %s157 = scalar_select %p156, %s20, 1
        %p158 = scmp.lt.s32.totalorder %s21, 0
        %s159 = scalar_select %p158, %s21, 0
        %s160 = sadd.s32 %s159, %s157
        %s161 = smul.addr %s160, 4
        %s162 = scalar_lea.vmem %s1, %s161
        %p163 = pneg %p77
        %p164 = pneg %p74
        %p165 = pneg %p105
        %p166 = pneg %p102
        %s167 = sand.u32 %s92, 1
        %s168 = scalar_lea.sflag [#allocation3], %s167
        %s169 = sand.u32 %s92, 1
        %s170 = scalar_lea.vmem [#allocation2], %s169
        %p171 = scmp.lt.s32.totalorder %s20, 1
        %s172 = scalar_select %p171, %s20, 1
        %s173 = smul.addr %s172, 2
        %s174 = smul.addr %s173, 8
        %s175 = scalar_lea.vmem %s0, %s174
        %p176 = scmp.lt.s32.totalorder %s20, 1
        %s177 = scalar_select %p176, %s20, 1
        %p178 = scmp.lt.s32.totalorder %s21, 0
        %s179 = scalar_select %p178, %s21, 0
        %s180 = sadd.s32 %s179, %s177
        %s181 = smul.addr %s180, 4
        %s182 = scalar_lea.vmem %s1, %s181
        %v183 = vld [vmem:[%s175] sm:$0xff]
        %v184 = vld [vmem:[%s175 + $0x8] sm:$0xff]
        %v185 = vld [vmem:[%s182] sm:$0x7]
        %187 = vset.pattern.permute.xlu0 1
        %188 = vperm.xlu0 %187, %v183
        %v189 = vpop.permute.xlu0 %188
        %192 = vset.pattern.permute.xlu0 1
        %193 = vperm.xlu0 %192, %v184
        %v194 = vpop.permute.xlu0 %193
        %v196 = vlaneseq
        %v197 = vshrl.u32 %v196, 7
        %v198 = vsub.s32 0, %v197
        %v199 = vrot.slane %v185, %v198
        %v200 = vsub.f32 %v189, %v199
        %v201 = vsub.f32 %v194, %v199
        %v202 = vmul.f32 %v200, %v200
        %v203 = vmul.f32 %v201, %v201
        %204 = vset.pattern.permute.xlu0 2
        %205 = vperm.xlu0 %204, %v183
        %v206 = vpop.permute.xlu0 %205
        %208 = vset.pattern.permute.xlu0 2
        %209 = vperm.xlu0 %208, %v184
        %v210 = vpop.permute.xlu0 %209
        %v212 = vlaneseq
        %v213 = vshrl.u32 %v212, 7
        %v214 = vsub.s32 1, %v213
        %v215 = vrot.slane %v185, %v214
        %v216 = vsub.f32 %v206, %v215
        %v217 = vsub.f32 %v210, %v215
        %v218 = vmul.f32 %v216, %v216
        %v219 = vmul.f32 %v217, %v217
        %v220 = vadd.f32 %v202, %v218
        %v221 = vadd.f32 %v203, %v219
        %222 = vset.pattern.permute.xlu0 3
        %223 = vperm.xlu0 %222, %v183
        %v224 = vpop.permute.xlu0 %223
        %226 = vset.pattern.permute.xlu0 3
        %227 = vperm.xlu0 %226, %v184
        %v228 = vpop.permute.xlu0 %227
        %v230 = vlaneseq
        %v231 = vshrl.u32 %v230, 7
        %v232 = vsub.s32 2, %v231
        %v233 = vrot.slane %v185, %v232
        %v234 = vsub.f32 %v224, %v233
        %v235 = vsub.f32 %v228, %v233
        %v236 = vmul.f32 %v234, %v234
        %v237 = vmul.f32 %v235, %v235
        %v238 = vadd.f32 %v220, %v236
        %v239 = vadd.f32 %v221, %v237
        %v240 = vrsqrt.pop %v238
        %v241 = vmul.f32 %v238, %v240
        %vm242 = vcmp.eq.f32.partialorder %v238, inf
        %v243 = vsel %vm242, %v238, %v241
        %vm244 = vcmp.eq.f32.partialorder %v238, 0.0
        %v245 = vand.u32 %v238, 2147483648
        %v246 = vsel %vm244, %v245, %v243
        %v247 = vrsqrt.pop %v239
        %v248 = vmul.f32 %v239, %v247
        %vm249 = vcmp.eq.f32.partialorder %v239, inf
        %v250 = vsel %vm249, %v239, %v248
        %vm251 = vcmp.eq.f32.partialorder %v239, 0.0
        %v252 = vand.u32 %v239, 2147483648
        %v253 = vsel %vm251, %v252, %v250
        %254 = vset.pattern.permute.xlu0 0
        %255 = vperm.xlu0 %254, %v183
        %v256 = vpop.permute.xlu0 %255
        %258 = vset.pattern.permute.xlu0 0
        %259 = vperm.xlu0 %258, %v184
        %v260 = vpop.permute.xlu0 %259
        %v262 = vsub.f32 %v256, %v246
        %v263 = vsub.f32 %v260, %v253
        %v264 = vmax.f32 %v262, %v263
        %v265 = vrot.slane %v264, 4
        %v266 = vmax.f32 %v264, %v265
        %v267 = vrot.slane %v266, 2
        %v268 = vmax.f32 %v266, %v267
        %v269 = vrot.slane %v268, 1
        %v270 = vmax.f32 %v268, %v269
        %v271 = vsub.f32 %v262, %v270
        %v272 = vsub.f32 %v263, %v270
        %v273 = vmul.f32 %v271, 1.442695
        %v274 = vpow.pop %v273
        %v275 = vmul.f32 %v272, 1.442695
        %v276 = vpow.pop %v275
        %v277 = vadd.f32 %v274, %v276
        %v278 = vrot.slane %v277, 4
        %v279 = vadd.f32 %v277, %v278
        %v280 = vrot.slane %v279, 2
        %v281 = vadd.f32 %v279, %v280
        %v282 = vrot.slane %v281, 1
        %v283 = vadd.f32 %v281, %v282
        %v284 = vlog2.pop %v283
        %v285 = vmul.f32 %v284, 0.6931472
        %v286 = vadd.f32 %v270, %v285
        %v287 = vsub.f32 0.0, %v286
        %v288 = vmul.f32 %v287, 0.01
        %289 = vst [vmem:[%s170] sm:$0x1] %v288
        %s290 = sand.u32 %s92, 1
        %s291 = scalar_lea.sflag [#allocation3], %s290
        %s292 = sand.u32 %s92, 1
        %s293 = scalar_lea.vmem [#allocation2], %s292
        // Predicated region
        $region29: #{tpu_custom_call.1} parent=27 // pred_check
          %p294 = pneg %p102
        $region30: #{tpu_custom_call.1} parent=27 // pred_check_branch
          %296 = sbr.rel (%p294) target = $region32
        $region31: #{tpu_custom_call.1} parent=27 // pred_region
          %s298 = ssub.s32 16, 16
          %299 = vsyncadd %s291, %s298
          %s300 = sadd.s32 %s21, %s20
          %s301 = smul.addr %s300, 16
          %s302 = scalar_lea.hbm %s2, %s301
          %s304 = sshll.u32 %s293, 4
          %s305 = int_to_ptr.vmem [resolvable:$true] %s304
          %307 = dma.vmem_to_hbm [thread:$0]  %s305, 16, %s302, %s291
        $region32: #{tpu_custom_call.1} parent=27 // pred_fallthru
          _
      $region28: #{tpu_custom_call.1} parent=5 // pred_fallthru
        _
      %p308 = scmp.le.s32.totalorder 2, %s11
      // Predicated region
      $region33: #{tpu_custom_call.1} parent=5 // pred_check
        %p309 = pneg %p308
      $region34: #{tpu_custom_call.1} parent=5 // pred_check_branch
        %311 = sbr.rel (%p309) target = $region36
      $region35: #{tpu_custom_call.1} parent=5 // pred_region
        %s312 = ssub.s32 %s11, 2
        // Predicated region
        $region37: #{tpu_custom_call.1} parent=35 // pred_check
          %p313 = pneg %p108
        $region38: #{tpu_custom_call.1} parent=35 // pred_check_branch
          %315 = sbr.rel (%p313) target = $region40
        $region39: #{tpu_custom_call.1} parent=35 // pred_region
          %s316 = sand.u32 %s93, 1
          %s317 = scalar_lea.sflag [#allocation3], %s316
          %s318 = sand.u32 %s93, 1
          %s319 = scalar_lea.vmem [#allocation2], %s318
          %320 = dma.done %s317, 16
        $region40: #{tpu_custom_call.1} parent=35 // pred_fallthru
          _
      $region36: #{tpu_custom_call.1} parent=5 // pred_fallthru
        _
    $region6: #{tpu_custom_call.1} parent=1 // loop_footer
      %s15 = sadd.s32 1, %s11
    $region7: #{tpu_custom_call.1} parent=1 // loop_footer_branch
      %10 = sbr.rel target = $region3
    $region8: #{tpu_custom_call.1} parent=1 // loop_exit
      _
    %321 = vsyncpa [#allocation3], 1
    %s322 = scalar_lea.sflag [#allocation3], 1
    %323 = vsyncpa %s322, 1

</llo_original>
